<compile_context>
chip_gen: v7x
topology: tpu7x:2x2x1
jax: 0.10.0
libtpu: 0.0.40
codegen_flags: <defaults>
</compile_context>

<pallas_src>
import jax
import jax.numpy as jnp
from jax import lax
from jax.experimental import pallas as pl
from jax.experimental.pallas import tpu as pltpu

EPS = 1e-5


def _residual_block_kernel(x_ref, w1_ref, g1_ref, be1_ref, mask_ref,
                           w2_ref, g2_ref, be2_ref, o_ref, acc_ref):
    k = pl.program_id(0)
    n = x_ref.shape[0]
    inv_n = 1.0 / n

    @pl.when(k == 0)
    def _init():
        acc_ref[...] = jnp.zeros_like(acc_ref)

    x = x_ref[...]                                        # (N, Dp) f32, resident

    # ---- lin1, output-feature block k: x @ W1[kblk, :]^T  (bf16 MXU, f32 acc) ----
    h = lax.dot_general(x.astype(jnp.bfloat16), w1_ref[...],
                        (((1,), (1,)), ((), ())),
                        preferred_element_type=jnp.float32)          # (N, TK)

    # ---- bn1 (training-mode batch stats, one-pass sums) ----
    s1 = jnp.sum(h, axis=0, keepdims=True)
    q1 = jnp.sum(h * h, axis=0, keepdims=True)
    m1 = s1 * inv_n
    v1 = jnp.maximum(q1 * inv_n - m1 * m1, 0.0)
    h = (h - m1) * lax.rsqrt(v1 + EPS) * g1_ref[...] + be1_ref[...]

    # ---- relu + dropout (precomputed inverted-dropout scale mask block) ----
    h = jnp.maximum(h, 0.0) * mask_ref[...]

    # ---- lin2 partial: accumulate h[:, kblk] @ W2[:, kblk]^T over K blocks ----
    acc_ref[...] += lax.dot_general(h.astype(jnp.bfloat16), w2_ref[...],
                                    (((1,), (1,)), ((), ())),
                                    preferred_element_type=jnp.float32)  # (N, Dp)

    # ---- finalize: bn2 + residual add + relu ----
    @pl.when(k == pl.num_programs(0) - 1)
    def _finalize():
        y = acc_ref[...]
        s2 = jnp.sum(y, axis=0, keepdims=True)
        q2 = jnp.sum(y * y, axis=0, keepdims=True)
        m2 = s2 * inv_n
        v2 = jnp.maximum(q2 * inv_n - m2 * m2, 0.0)
        y = (y - m2) * lax.rsqrt(v2 + EPS) * g2_ref[...] + be2_ref[...]
        o_ref[...] = jnp.maximum(y + x, 0.0).astype(o_ref.dtype)


def residual_block(x, params, key, *, dropout=0.2, training=True, block_k=128):
    """x: (N, D) float32. params: dict (see init_params). key: PRNG key for dropout.

    BN always uses batch statistics (the module's default/training state); the
    `training` flag only gates dropout, as in the previous kernel.
    """
    N, D = x.shape
    Dp = pl.cdiv(D, 128) * 128            # lane-dense feature dim
    TK = min(block_k, Dp)
    assert Dp % TK == 0
    pad = Dp - D

    x_p = jnp.pad(x.astype(jnp.float32), ((0, 0), (0, pad))) if pad else x.astype(jnp.float32)
    pad_mat = lambda w: jnp.pad(w, ((0, pad), (0, pad))).astype(jnp.bfloat16)
    pad_row = lambda v: jnp.pad(v.reshape(1, D), ((0, 0), (0, pad))).astype(jnp.float32)

    w1 = pad_mat(params["w1"])            # (Dp, Dp), untransposed (out, in)
    w2 = pad_mat(params["w2"])
    g1, be1 = pad_row(params["g1"]), pad_row(params["be1"])
    g2, be2 = pad_row(params["g2"]), pad_row(params["be2"])
    # NOTE: linear biases b1/b2 are intentionally unused: a per-feature constant
    # added before a training-mode BatchNorm is cancelled exactly by the mean.

    if training and dropout > 0.0:
        keep = jax.random.bernoulli(key, 1.0 - dropout, (N, Dp))
        mask = keep.astype(jnp.float32) * (1.0 / (1.0 - dropout))
    else:
        mask = jnp.ones((N, Dp), jnp.float32)
    # TODO(synk): move dropout RNG on-chip (pltpu.prng_seed / prng_random_bits, seeded
    # per grid step) once those primitives have an interpret-mode lowering.

    nk = Dp // TK
    grid_spec = pltpu.PrefetchScalarGridSpec(
        num_scalar_prefetch=0,
        grid=(nk,),
        in_specs=[
            pl.BlockSpec((N, Dp), lambda k: (0, 0)),      # x (resident across steps)
            pl.BlockSpec((TK, Dp), lambda k: (k, 0)),     # W1 out-feature block
            pl.BlockSpec((1, TK), lambda k: (0, k)),      # bn1 gamma block
            pl.BlockSpec((1, TK), lambda k: (0, k)),      # bn1 beta block
            pl.BlockSpec((N, TK), lambda k: (0, k)),      # dropout mask block
            pl.BlockSpec((Dp, TK), lambda k: (0, k)),     # W2 contraction block
            pl.BlockSpec((1, Dp), lambda k: (0, 0)),      # bn2 gamma (resident)
            pl.BlockSpec((1, Dp), lambda k: (0, 0)),      # bn2 beta (resident)
        ],
        out_specs=pl.BlockSpec((N, Dp), lambda k: (0, 0)),
        scratch_shapes=[pltpu.VMEM((N, Dp), jnp.float32)],
    )

    flops = 4 * N * Dp * Dp                               # two matmuls
    bytes_accessed = 2 * Dp * Dp * 2 + 3 * N * Dp * 4 + 4 * Dp * 4

    out_p = pl.pallas_call(
        _residual_block_kernel,
        grid_spec=grid_spec,
        out_shape=jax.ShapeDtypeStruct((N, Dp), x.dtype),
        compiler_params=pltpu.CompilerParams(
            dimension_semantics=("arbitrary",),           # K / reduction axis
            vmem_limit_bytes=48 * 1024 * 1024,            # > 32 MiB default, < v7x 64 MiB/TC
        ),
        cost_estimate=pl.CostEstimate(flops=flops, transcendentals=0,
                                      bytes_accessed=bytes_accessed),
    )(x_p, w1, g1, be1, mask, w2, g2, be2)
    return out_p[:, :D] if pad else out_p


def init_params(key, dim):
    """Deterministic synthetic parameters matching nn.Linear / nn.BatchNorm1d shapes."""
    k1, k2, k3, k4 = jax.random.split(key, 4)
    bound = 1.0 / (dim ** 0.5)
    return {
        "w1": jax.random.uniform(k1, (dim, dim), jnp.float32, -bound, bound),
        "b1": jax.random.uniform(k2, (dim,), jnp.float32, -bound, bound),   # unused: cancelled by BN
        "g1": jnp.ones((dim,), jnp.float32),
        "be1": jnp.zeros((dim,), jnp.float32),
        "w2": jax.random.uniform(k3, (dim, dim), jnp.float32, -bound, bound),
        "b2": jax.random.uniform(k4, (dim,), jnp.float32, -bound, bound),   # unused: cancelled by BN
        "g2": jnp.ones((dim,), jnp.float32),
        "be2": jnp.zeros((dim,), jnp.float32),
    }


def _reference(x, params):
    """Pure-JAX mirror of the kernel math (bf16 matmul operands, f32 acc, batch BN,
    no dropout, biases omitted because they cancel under training-mode BN)."""
    def bn(h, g, b):
        m = jnp.mean(h, axis=0, keepdims=True)
        v = jnp.maximum(jnp.mean(h * h, axis=0, keepdims=True) - m * m, 0.0)
        return (h - m) * lax.rsqrt(v + EPS) * g + b

    def mm(a, w):
        return lax.dot_general(a.astype(jnp.bfloat16), w.astype(jnp.bfloat16),
                               (((1,), (1,)), ((), ())),
                               preferred_element_type=jnp.float32)

    h = jnp.maximum(bn(mm(x, params["w1"]), params["g1"], params["be1"]), 0.0)
    y = bn(mm(h, params["w2"]), params["g2"], params["be2"])
    return jnp.maximum(y + x, 0.0)


if __name__ == "__main__":
    key = jax.random.PRNGKey(0)
    kx, kp, kd, kx2, kp2 = jax.random.split(key, 5)

    # Small demo: D=32 pads to one 128-lane block (grid of 1).
    N, D = 8, 32
    x = jax.random.normal(kx, (N, D), jnp.float32)
    params = init_params(kp, D)

    out = residual_block(x, params, kd, dropout=0.2, training=True)
    jax.block_until_ready(out)
    assert out.shape == (N, D) and out.dtype == jnp.float32
    assert bool(jnp.all(out >= 0.0))                    # final ReLU
    assert bool(jnp.all(jnp.isfinite(out)))

    # No-dropout numeric check vs a pure-JAX reference.
    out_eval = residual_block(x, params, kd, dropout=0.2, training=False)
    ref_eval = _reference(x, params)
    assert bool(jnp.allclose(out_eval, ref_eval, atol=2e-2, rtol=2e-2))

    # D=256 exercises the multi-step K-blocked accumulation path (grid of 2).
    N2, D2 = 8, 256
    x2 = jax.random.normal(kx2, (N2, D2), jnp.float32)
    params2 = init_params(kp2, D2)
    out2 = residual_block(x2, params2, kd, dropout=0.2, training=False, block_k=128)
    jax.block_until_ready(out2)
    ref2 = _reference(x2, params2)
    assert out2.shape == (N2, D2)
    assert bool(jnp.allclose(out2, ref2, atol=2e-2, rtol=2e-2))

    print("KERNEL_OK")
</pallas_src>

<mosaic_0001>
module attributes {stable_mosaic.version = 11 : i64} {
  func.func @_residual_block_kernel(%arg0: i32, %arg1: memref<8x128xf32, #tpu.memory_space<vmem>>, %arg2: memref<128x128xbf16, #tpu.memory_space<vmem>>, %arg3: memref<1x128xf32, #tpu.memory_space<vmem>>, %arg4: memref<1x128xf32, #tpu.memory_space<vmem>>, %arg5: memref<8x128xf32, #tpu.memory_space<vmem>>, %arg6: memref<128x128xbf16, #tpu.memory_space<vmem>>, %arg7: memref<1x128xf32, #tpu.memory_space<vmem>>, %arg8: memref<1x128xf32, #tpu.memory_space<vmem>>, %arg9: memref<8x128xf32, #tpu.memory_space<vmem>>, %arg10: memref<8x128xf32, #tpu.memory_space<vmem>>) attributes {dimension_semantics = [#tpu.dimension_semantics<arbitrary>], iteration_bounds = array<i64: 1>, scalar_prefetch = 0 : i64, scratch_operands = 1 : i64, tpu.core_type = #tpu.core_type<tc>, window_params = [{pipeline_mode = #tpu.pipeline_mode<synchronous>, transform_indices = @transform_0, window_bounds = array<i64: 8, 128>}, {transform_indices = @transform_1, window_bounds = array<i64: 128, 128>}, {transform_indices = @transform_2, window_bounds = array<i64: 1, 128>}, {transform_indices = @transform_3, window_bounds = array<i64: 1, 128>}, {transform_indices = @transform_4, window_bounds = array<i64: 8, 128>}, {transform_indices = @transform_5, window_bounds = array<i64: 128, 128>}, {pipeline_mode = #tpu.pipeline_mode<synchronous>, transform_indices = @transform_6, window_bounds = array<i64: 1, 128>}, {pipeline_mode = #tpu.pipeline_mode<synchronous>, transform_indices = @transform_7, window_bounds = array<i64: 1, 128>}, {pipeline_mode = #tpu.pipeline_mode<synchronous>, transform_indices = @transform_8, window_bounds = array<i64: 8, 128>}]} {
    %c0_i32 = arith.constant 0 : i32
    %0 = arith.cmpi eq, %arg0, %c0_i32 : i32
    %1 = arith.extui %0 : i1 to i32
    %c0_i32_0 = arith.constant 0 : i32
    %2 = arith.cmpi ne, %1, %c0_i32_0 : i32
    scf.if %2 {
      %cst_26 = arith.constant 0.000000e+00 : f32
      %46 = vector.broadcast %cst_26 : f32 to vector<8x128xf32>
      %c0_27 = arith.constant 0 : index
      %c0_28 = arith.constant 0 : index
      %47 = vector.load %arg10[%c0_27, %c0_28] : memref<8x128xf32, #tpu.memory_space<vmem>>, vector<8x128xf32>
      tpu.vector_store %arg10[%c0_27, %c0_28], %46 {strides = array<i32>} : memref<8x128xf32, #tpu.memory_space<vmem>>, vector<8x128xf32>,
    } else {
    }
    %c0 = arith.constant 0 : index
    %c0_1 = arith.constant 0 : index
    %3 = vector.load %arg1[%c0, %c0_1] : memref<8x128xf32, #tpu.memory_space<vmem>>, vector<8x128xf32>
    %4 = arith.truncf %3 : vector<8x128xf32> to vector<8x128xbf16>
    %c0_2 = arith.constant 0 : index
    %c0_3 = arith.constant 0 : index
    %5 = vector.load %arg2[%c0_2, %c0_3] : memref<128x128xbf16, #tpu.memory_space<vmem>>, vector<128x128xbf16>
    %cst = arith.constant dense<0.000000e+00> : vector<8x128xf32>
    %6 = tpu.matmul %4, %5, %cst {dimension_numbers = #tpu.dot_dimension_numbers<[1], [1], [0], [0], [0, 0, 1, 0], [], []>} : vector<8x128xbf16>, vector<128x128xbf16>, vector<8x128xf32> -> vector<8x128xf32>
    %cst_4 = arith.constant dense<0.000000e+00> : vector<128xf32>
    %7 = vector.multi_reduction <add>, %6, %cst_4 [0] : vector<8x128xf32> to vector<128xf32>
    %8 = vector.shape_cast %7 : vector<128xf32> to vector<1x128xf32>
    %9 = arith.mulf %6, %6 : vector<8x128xf32>
    %cst_5 = arith.constant dense<0.000000e+00> : vector<128xf32>
    %10 = vector.multi_reduction <add>, %9, %cst_5 [0] : vector<8x128xf32> to vector<128xf32>
    %11 = vector.shape_cast %10 : vector<128xf32> to vector<1x128xf32>
    %cst_6 = arith.constant 1.250000e-01 : f32
    %12 = vector.broadcast %cst_6 : f32 to vector<1x128xf32>
    %13 = arith.mulf %8, %12 : vector<1x128xf32>
    %cst_7 = arith.constant 1.250000e-01 : f32
    %14 = vector.broadcast %cst_7 : f32 to vector<1x128xf32>
    %15 = arith.mulf %11, %14 : vector<1x128xf32>
    %16 = arith.mulf %13, %13 : vector<1x128xf32>
    %17 = arith.subf %15, %16 : vector<1x128xf32>
    %cst_8 = arith.constant 0.000000e+00 : f32
    %18 = vector.broadcast %cst_8 : f32 to vector<1x128xf32>
    %19 = arith.maximumf %17, %18 : vector<1x128xf32>
    %20 = vector.broadcast %13 : vector<1x128xf32> to vector<8x128xf32>
    %21 = arith.subf %6, %20 : vector<8x128xf32>
    %cst_9 = arith.constant 9.99999974E-6 : f32
    %22 = vector.broadcast %cst_9 : f32 to vector<1x128xf32>
    %23 = arith.addf %19, %22 : vector<1x128xf32>
    %24 = math.rsqrt %23 : vector<1x128xf32>
    %25 = vector.broadcast %24 : vector<1x128xf32> to vector<8x128xf32>
    %26 = arith.mulf %21, %25 : vector<8x128xf32>
    %c0_10 = arith.constant 0 : index
    %c0_11 = arith.constant 0 : index
    %27 = vector.load %arg3[%c0_10, %c0_11] : memref<1x128xf32, #tpu.memory_space<vmem>>, vector<1x128xf32>
    %28 = vector.broadcast %27 : vector<1x128xf32> to vector<8x128xf32>
    %29 = arith.mulf %26, %28 : vector<8x128xf32>
    %c0_12 = arith.constant 0 : index
    %c0_13 = arith.constant 0 : index
    %30 = vector.load %arg4[%c0_12, %c0_13] : memref<1x128xf32, #tpu.memory_space<vmem>>, vector<1x128xf32>
    %31 = vector.broadcast %30 : vector<1x128xf32> to vector<8x128xf32>
    %32 = arith.addf %29, %31 : vector<8x128xf32>
    %cst_14 = arith.constant 0.000000e+00 : f32
    %33 = vector.broadcast %cst_14 : f32 to vector<8x128xf32>
    %34 = arith.maximumf %32, %33 : vector<8x128xf32>
    %c0_15 = arith.constant 0 : index
    %c0_16 = arith.constant 0 : index
    %35 = vector.load %arg5[%c0_15, %c0_16] : memref<8x128xf32, #tpu.memory_space<vmem>>, vector<8x128xf32>
    %36 = arith.mulf %34, %35 : vector<8x128xf32>
    %c0_17 = arith.constant 0 : index
    %c0_18 = arith.constant 0 : index
    %37 = vector.load %arg10[%c0_17, %c0_18] : memref<8x128xf32, #tpu.memory_space<vmem>>, vector<8x128xf32>
    %38 = arith.truncf %36 : vector<8x128xf32> to vector<8x128xbf16>
    %c0_19 = arith.constant 0 : index
    %c0_20 = arith.constant 0 : index
    %39 = vector.load %arg6[%c0_19, %c0_20] : memref<128x128xbf16, #tpu.memory_space<vmem>>, vector<128x128xbf16>
    %cst_21 = arith.constant dense<0.000000e+00> : vector<8x128xf32>
    %40 = tpu.matmul %38, %39, %cst_21 {dimension_numbers = #tpu.dot_dimension_numbers<[1], [1], [0], [0], [0, 0, 1, 0], [], []>} : vector<8x128xbf16>, vector<128x128xbf16>, vector<8x128xf32> -> vector<8x128xf32>
    %41 = arith.addf %37, %40 : vector<8x128xf32>
    %c0_22 = arith.constant 0 : index
    %c0_23 = arith.constant 0 : index
    %42 = vector.load %arg10[%c0_22, %c0_23] : memref<8x128xf32, #tpu.memory_space<vmem>>, vector<8x128xf32>
    tpu.vector_store %arg10[%c0_22, %c0_23], %41 {strides = array<i32>} : memref<8x128xf32, #tpu.memory_space<vmem>>, vector<8x128xf32>,
    %c0_i32_24 = arith.constant 0 : i32
    %43 = arith.cmpi eq, %arg0, %c0_i32_24 : i32
    %44 = arith.extui %43 : i1 to i32
    %c0_i32_25 = arith.constant 0 : i32
    %45 = arith.cmpi ne, %44, %c0_i32_25 : i32
    scf.if %45 {
      %c0_26 = arith.constant 0 : index
      %c0_27 = arith.constant 0 : index
      %46 = vector.load %arg10[%c0_26, %c0_27] : memref<8x128xf32, #tpu.memory_space<vmem>>, vector<8x128xf32>
      %cst_28 = arith.constant dense<0.000000e+00> : vector<128xf32>
      %47 = vector.multi_reduction <add>, %46, %cst_28 [0] : vector<8x128xf32> to vector<128xf32>
      %48 = vector.shape_cast %47 : vector<128xf32> to vector<1x128xf32>
      %49 = arith.mulf %46, %46 : vector<8x128xf32>
      %cst_29 = arith.constant dense<0.000000e+00> : vector<128xf32>
      %50 = vector.multi_reduction <add>, %49, %cst_29 [0] : vector<8x128xf32> to vector<128xf32>
      %51 = vector.shape_cast %50 : vector<128xf32> to vector<1x128xf32>
      %cst_30 = arith.constant 1.250000e-01 : f32
      %52 = vector.broadcast %cst_30 : f32 to vector<1x128xf32>
      %53 = arith.mulf %48, %52 : vector<1x128xf32>
      %cst_31 = arith.constant 1.250000e-01 : f32
      %54 = vector.broadcast %cst_31 : f32 to vector<1x128xf32>
      %55 = arith.mulf %51, %54 : vector<1x128xf32>
      %56 = arith.mulf %53, %53 : vector<1x128xf32>
      %57 = arith.subf %55, %56 : vector<1x128xf32>
      %cst_32 = arith.constant 0.000000e+00 : f32
      %58 = vector.broadcast %cst_32 : f32 to vector<1x128xf32>
      %59 = arith.maximumf %57, %58 : vector<1x128xf32>
      %60 = vector.broadcast %53 : vector<1x128xf32> to vector<8x128xf32>
      %61 = arith.subf %46, %60 : vector<8x128xf32>
      %cst_33 = arith.constant 9.99999974E-6 : f32
      %62 = vector.broadcast %cst_33 : f32 to vector<1x128xf32>
      %63 = arith.addf %59, %62 : vector<1x128xf32>
      %64 = math.rsqrt %63 : vector<1x128xf32>
      %65 = vector.broadcast %64 : vector<1x128xf32> to vector<8x128xf32>
      %66 = arith.mulf %61, %65 : vector<8x128xf32>
      %c0_34 = arith.constant 0 : index
      %c0_35 = arith.constant 0 : index
      %67 = vector.load %arg7[%c0_34, %c0_35] : memref<1x128xf32, #tpu.memory_space<vmem>>, vector<1x128xf32>
      %68 = vector.broadcast %67 : vector<1x128xf32> to vector<8x128xf32>
      %69 = arith.mulf %66, %68 : vector<8x128xf32>
      %c0_36 = arith.constant 0 : index
      %c0_37 = arith.constant 0 : index
      %70 = vector.load %arg8[%c0_36, %c0_37] : memref<1x128xf32, #tpu.memory_space<vmem>>, vector<1x128xf32>
      %71 = vector.broadcast %70 : vector<1x128xf32> to vector<8x128xf32>
      %72 = arith.addf %69, %71 : vector<8x128xf32>
      %73 = arith.addf %72, %3 : vector<8x128xf32>
      %cst_38 = arith.constant 0.000000e+00 : f32
      %74 = vector.broadcast %cst_38 : f32 to vector<8x128xf32>
      %75 = arith.maximumf %73, %74 : vector<8x128xf32>
      %c0_39 = arith.constant 0 : index
      %c0_40 = arith.constant 0 : index
      %76 = vector.load %arg9[%c0_39, %c0_40] : memref<8x128xf32, #tpu.memory_space<vmem>>, vector<8x128xf32>
      tpu.vector_store %arg9[%c0_39, %c0_40], %75 {strides = array<i32>} : memref<8x128xf32, #tpu.memory_space<vmem>>, vector<8x128xf32>,
    } else {
    }
    return
  }
  func.func @transform_0(%arg0: i32) -> (i32, i32) {
    %c0_i32 = arith.constant 0 : i32
    %c0_i32_0 = arith.constant 0 : i32
    %c0_i32_1 = arith.constant 0 : i32
    return %c0_i32, %c0_i32_0 : i32, i32
  }
  func.func @transform_1(%arg0: i32) -> (i32, i32) {
    %c0_i32 = arith.constant 0 : i32
    %c0_i32_0 = arith.constant 0 : i32
    return %arg0, %c0_i32 : i32, i32
  }
  func.func @transform_2(%arg0: i32) -> (i32, i32) {
    %c0_i32 = arith.constant 0 : i32
    %c0_i32_0 = arith.constant 0 : i32
    return %c0_i32, %arg0 : i32, i32
  }
  func.func @transform_3(%arg0: i32) -> (i32, i32) {
    %c0_i32 = arith.constant 0 : i32
    %c0_i32_0 = arith.constant 0 : i32
    return %c0_i32, %arg0 : i32, i32
  }
  func.func @transform_4(%arg0: i32) -> (i32, i32) {
    %c0_i32 = arith.constant 0 : i32
    %c0_i32_0 = arith.constant 0 : i32
    return %c0_i32, %arg0 : i32, i32
  }
  func.func @transform_5(%arg0: i32) -> (i32, i32) {
    %c0_i32 = arith.constant 0 : i32
    %c0_i32_0 = arith.constant 0 : i32
    return %c0_i32, %arg0 : i32, i32
  }
  func.func @transform_6(%arg0: i32) -> (i32, i32) {
    %c0_i32 = arith.constant 0 : i32
    %c0_i32_0 = arith.constant 0 : i32
    %c0_i32_1 = arith.constant 0 : i32
    return %c0_i32, %c0_i32_0 : i32, i32
  }
  func.func @transform_7(%arg0: i32) -> (i32, i32) {
    %c0_i32 = arith.constant 0 : i32
    %c0_i32_0 = arith.constant 0 : i32
    %c0_i32_1 = arith.constant 0 : i32
    return %c0_i32, %c0_i32_0 : i32, i32
  }
  func.func @transform_8(%arg0: i32) -> (i32, i32) {
    %c0_i32 = arith.constant 0 : i32
    %c0_i32_0 = arith.constant 0 : i32
    %c0_i32_1 = arith.constant 0 : i32
    return %c0_i32, %c0_i32_0 : i32, i32
  }
}

</mosaic_0001>

<llo_original>
// kernel: tpu_custom_call.1
$region0: #{tpu_custom_call.1}
  #allocation0 [shape = 'u32[]', space=smem, size = 0x4, offset = 0x4, fixed_abs, tag = 'smem constant byte address 0x4 - core index']
  #allocation1 [shape = 'u32[144,128]{1,0:T(1,128)}', space=vmem, size = 0x12000, scoped, tag = 'internal scratch']
  #allocation2 [shape = 'f32[8,128]{1,0:T(8,128)}', space=vmem, size = 0x1000, scoped, tag = 'scratch operand']
  %s0 = inlined_call_operand.hbm [shape: f32[8,128], index: 0, kind: input, shape index: {}]
  %s1 = inlined_call_operand.hbm [shape: bf16[128,128], index: 1, kind: input, shape index: {}]
  %s2 = inlined_call_operand.vmem [shape: f32[1,128], index: 2, kind: input, shape index: {}]
  %s3 = inlined_call_operand.vmem [shape: f32[1,128], index: 3, kind: input, shape index: {}]
  %s4 = inlined_call_operand.vmem [shape: f32[8,128], index: 4, kind: input, shape index: {}]
  %s5 = inlined_call_operand.hbm [shape: bf16[128,128], index: 5, kind: input, shape index: {}]
  %s6 = inlined_call_operand.vmem [shape: f32[1,128], index: 6, kind: input, shape index: {}]
  %s7 = inlined_call_operand.vmem [shape: f32[1,128], index: 7, kind: input, shape index: {}]
  %s8 = inlined_call_operand.hbm [shape: f32[8,128], index: 8, kind: output, shape index: {}]
  %s9 = sld [smem:[#allocation0]]
  $region62: #{tpu_custom_call.1} parent=0
    _
  %s11 = ssub.s32 1, %s9
  %s12 = scalar_select 0, %s11, %s9
  $region1: #{tpu_custom_call.1} parent=0
    #allocation3 [shape = 'u8[4096]{0}', space=vmem, size = 0x1000, scoped, tag = 'input window, operand 0, single buffered']
    #allocation4 [shape = 's32[1]{0}', space=sflag, size = 0x4, scoped, tag = 'scoped memory for tpu_custom_call.1']
    #allocation5 [shape = 's32[1]{0}', space=sflag, size = 0x4, scoped, tag = 'scoped memory for tpu_custom_call.1']
    #allocation6 [shape = 'u8[32768]{0}', space=vmem, size = 0x8000, scoped, tag = 'input window, operand 1, single buffered']
    #allocation7 [shape = 's32[1]{0}', space=sflag, size = 0x4, scoped, tag = 'scoped memory for tpu_custom_call.1']
    #allocation8 [shape = 'u8[32768]{0}', space=vmem, size = 0x8000, scoped, tag = 'input window, operand 5, single buffered']
    #allocation9 [shape = 'u8[4096]{0}', space=vmem, size = 0x1000, scoped, tag = 'output window, operand 0, single buffered']
    %13 = vsyncpa [#allocation4], 0
    %14 = vsyncpa [#allocation7], 0
    %15 = vsyncpa [#allocation5], 0
    // Predicated region
    $region2: #{tpu_custom_call.1} parent=1 // pred_check
      _
    $region3: #{tpu_custom_call.1} parent=1 // pred_check_branch
      %17 = sbr.rel (0) target = $region5
    $region4: #{tpu_custom_call.1} parent=1 // pred_region
      %s19 = ssub.s32 128, 128
      %20 = vsyncadd [#allocation4], %s19
      %s22 = sshll.u32 [#allocation3], 4
      %s23 = int_to_ptr.vmem [resolvable:$true] %s22
      %25 = dma.hbm_to_vmem [thread:$0]  %s0, 128, %s23, [#allocation4]
    $region5: #{tpu_custom_call.1} parent=1 // pred_fallthru
      _
    // Predicated region
    $region6: #{tpu_custom_call.1} parent=1 // pred_check
      _
    $region7: #{tpu_custom_call.1} parent=1 // pred_check_branch
      %27 = sbr.rel (0) target = $region9
    $region8: #{tpu_custom_call.1} parent=1 // pred_region
      %s29 = ssub.s32 1024, 1024
      %30 = vsyncadd [#allocation7], %s29
      %s31 = sshll.u32 [#allocation6], 4
      %s32 = int_to_ptr.vmem [resolvable:$true] %s31
      %37 = dma.hbm_to_vmem [thread:$0]  %s1, 1024, %s32, [#allocation7], 64, 64, 4
    $region9: #{tpu_custom_call.1} parent=1 // pred_fallthru
      _
    // Predicated region
    $region10: #{tpu_custom_call.1} parent=1 // pred_check
      _
    $region11: #{tpu_custom_call.1} parent=1 // pred_check_branch
      %39 = sbr.rel (0) target = $region13
    $region12: #{tpu_custom_call.1} parent=1 // pred_region
      _
    $region13: #{tpu_custom_call.1} parent=1 // pred_fallthru
      _
    // Predicated region
    $region14: #{tpu_custom_call.1} parent=1 // pred_check
      _
    $region15: #{tpu_custom_call.1} parent=1 // pred_check_branch
      %41 = sbr.rel (0) target = $region17
    $region16: #{tpu_custom_call.1} parent=1 // pred_region
      _
    $region17: #{tpu_custom_call.1} parent=1 // pred_fallthru
      _
    // Predicated region
    $region18: #{tpu_custom_call.1} parent=1 // pred_check
      _
    $region19: #{tpu_custom_call.1} parent=1 // pred_check_branch
      %43 = sbr.rel (0) target = $region21
    $region20: #{tpu_custom_call.1} parent=1 // pred_region
      _
    $region21: #{tpu_custom_call.1} parent=1 // pred_fallthru
      _
    // Predicated region
    $region22: #{tpu_custom_call.1} parent=1 // pred_check
      _
    $region23: #{tpu_custom_call.1} parent=1 // pred_check_branch
      %45 = sbr.rel (0) target = $region25
    $region24: #{tpu_custom_call.1} parent=1 // pred_region
      %s47 = ssub.s32 1024, 1024
      %48 = vsyncadd [#allocation7], %s47
      %s49 = sshll.u32 [#allocation8], 4
      %s50 = int_to_ptr.vmem [resolvable:$true] %s49
      %55 = dma.hbm_to_vmem [thread:$0]  %s5, 1024, %s50, [#allocation7], 64, 64, 4
    $region25: #{tpu_custom_call.1} parent=1 // pred_fallthru
      _
    // Predicated region
    $region26: #{tpu_custom_call.1} parent=1 // pred_check
      _
    $region27: #{tpu_custom_call.1} parent=1 // pred_check_branch
      %57 = sbr.rel (0) target = $region29
    $region28: #{tpu_custom_call.1} parent=1 // pred_region
      _
    $region29: #{tpu_custom_call.1} parent=1 // pred_fallthru
      _
    // Predicated region
    $region30: #{tpu_custom_call.1} parent=1 // pred_check
      _
    $region31: #{tpu_custom_call.1} parent=1 // pred_check_branch
      %59 = sbr.rel (0) target = $region33
    $region32: #{tpu_custom_call.1} parent=1 // pred_region
      _
    $region33: #{tpu_custom_call.1} parent=1 // pred_fallthru
      _
    // Predicated region
    $region34: #{tpu_custom_call.1} parent=1 // pred_check
      _
    $region35: #{tpu_custom_call.1} parent=1 // pred_check_branch
      %61 = sbr.rel (0) target = $region37
    $region36: #{tpu_custom_call.1} parent=1 // pred_region
      %62 = dma.done [#allocation4], 128
    $region37: #{tpu_custom_call.1} parent=1 // pred_fallthru
      _
    // Predicated region
    $region38: #{tpu_custom_call.1} parent=1 // pred_check
      _
    $region39: #{tpu_custom_call.1} parent=1 // pred_check_branch
      %64 = sbr.rel (0) target = $region41
    $region40: #{tpu_custom_call.1} parent=1 // pred_region
      %65 = dma.done [#allocation7], 1024
    $region41: #{tpu_custom_call.1} parent=1 // pred_fallthru
      _
    // Predicated region
    $region42: #{tpu_custom_call.1} parent=1 // pred_check
      _
    $region43: #{tpu_custom_call.1} parent=1 // pred_check_branch
      %67 = sbr.rel (0) target = $region45
    $region44: #{tpu_custom_call.1} parent=1 // pred_region
      %68 = dma.done [#allocation7], 1024
    $region45: #{tpu_custom_call.1} parent=1 // pred_fallthru
      _
    %p70 = scmp.eq.s32.totalorder 0, 0
    // Predicated region
    $region46: #{tpu_custom_call.1} parent=1 // pred_check
      %p71 = pneg %p70
    $region47: #{tpu_custom_call.1} parent=1 // pred_check_branch
      %73 = sbr.rel (%p71) target = $region49
    $region48: #{tpu_custom_call.1} parent=1 // pred_region
      %74 = vst [vmem:[#allocation2] sm:$0xff] 0.0
    $region49: #{tpu_custom_call.1} parent=1 // pred_fallthru
      _
    %v75 = vld [vmem:[#allocation3] sm:$0xff]
    %v76 = vpack.c.bf16 %v75, %v75
    %v77 = vld [vmem:[#allocation6] sm:$0xf]
    %v78 = vld [vmem:[#allocation6 + $0x4] sm:$0xf]
    %v79 = vld [vmem:[#allocation6 + $0x8] sm:$0xf]
    %v80 = vld [vmem:[#allocation6 + $0xc] sm:$0xf]
    %v81 = vld [vmem:[#allocation6 + $0x10] sm:$0xf]
    %v82 = vld [vmem:[#allocation6 + $0x14] sm:$0xf]
    %v83 = vld [vmem:[#allocation6 + $0x18] sm:$0xf]
    %v84 = vld [vmem:[#allocation6 + $0x1c] sm:$0xf]
    %v85 = vld [vmem:[#allocation6 + $0x20] sm:$0xf]
    %v86 = vld [vmem:[#allocation6 + $0x24] sm:$0xf]
    %v87 = vld [vmem:[#allocation6 + $0x28] sm:$0xf]
    %v88 = vld [vmem:[#allocation6 + $0x2c] sm:$0xf]
    %v89 = vld [vmem:[#allocation6 + $0x30] sm:$0xf]
    %v90 = vld [vmem:[#allocation6 + $0x34] sm:$0xf]
    %v91 = vld [vmem:[#allocation6 + $0x38] sm:$0xf]
    %v92 = vld [vmem:[#allocation6 + $0x3c] sm:$0xf]
    %v109 = vunpack.c.l.b16 %v77
    %v110 = vunpack.c.l.b16 %v78
    %v111 = vunpack.c.l.b16 %v79
    %v112 = vunpack.c.l.b16 %v80
    %v113 = vunpack.c.l.b16 %v81
    %v114 = vunpack.c.l.b16 %v82
    %v115 = vunpack.c.l.b16 %v83
    %v116 = vunpack.c.l.b16 %v84
    %v117 = vunpack.c.l.b16 %v85
    %v118 = vunpack.c.l.b16 %v86
    %v119 = vunpack.c.l.b16 %v87
    %v120 = vunpack.c.l.b16 %v88
    %v121 = vunpack.c.l.b16 %v89
    %v122 = vunpack.c.l.b16 %v90
    %v123 = vunpack.c.l.b16 %v91
    %v124 = vunpack.c.l.b16 %v92
    %v125 = vpack.c.b16 %v110, %v109
    %v126 = vpack.c.b16 %v112, %v111
    %v127 = vpack.c.b16 %v114, %v113
    %v128 = vpack.c.b16 %v116, %v115
    %v129 = vpack.c.b16 %v118, %v117
    %v130 = vpack.c.b16 %v120, %v119
    %v131 = vpack.c.b16 %v122, %v121
    %v132 = vpack.c.b16 %v124, %v123
    %141 = vmatprep.subr.bf16.mxu0 0
    %142 = vmatpush1.bf16.xpose.msra.mxu0 %v125
    %143 = vmatprep.subr.bf16.mxu0 0
    %144 = vmatpush1.bf16.xpose.msra.mxu0 %v126
    %145 = vmatprep.subr.bf16.mxu0 0
    %146 = vmatpush1.bf16.xpose.msra.mxu0 %v127
    %147 = vmatprep.subr.bf16.mxu0 0
    %148 = vmatpush1.bf16.xpose.msra.mxu0 %v128
    %149 = vmatprep.subr.bf16.mxu0 0
    %150 = vmatpush1.bf16.xpose.msra.mxu0 %v129
    %151 = vmatprep.subr.bf16.mxu0 0
    %152 = vmatpush1.bf16.xpose.msra.mxu0 %v130
    %153 = vmatprep.subr.bf16.mxu0 0
    %154 = vmatpush1.bf16.xpose.msra.mxu0 %v131
    %155 = vmatprep.subr.bf16.mxu0 0
    %156 = vmatpush1.bf16.xpose.msra.mxu0 %v132
    %157 = vmatprep.subr.bf16.mxu0 0
    %158 = vmatpush1.bf16.xpose.msra.mxu0 0
    %159 = vmatprep.subr.bf16.mxu0 0
    %160 = vmatpush1.bf16.xpose.msra.mxu0 0
    %161 = vmatprep.subr.bf16.mxu0 0
    %162 = vmatpush1.bf16.xpose.msra.mxu0 0
    %163 = vmatprep.subr.bf16.mxu0 0
    %164 = vmatpush1.bf16.xpose.msra.mxu0 0
    %165 = vmatprep.subr.bf16.mxu0 0
    %166 = vmatpush1.bf16.xpose.msra.mxu0 0
    %167 = vmatprep.subr.bf16.mxu0 0
    %168 = vmatpush1.bf16.xpose.msra.mxu0 0
    %169 = vmatprep.subr.bf16.mxu0 0
    %170 = vmatpush1.bf16.xpose.msra.mxu0 0
    %171 = vmatprep.subr.bf16.mxu0 0
    %172 = vmatpush1.bf16.xpose.msra.mxu0 0
    %173 = vmatprep.mubr.bf16.mxu0 0
    %174 = vmatmul.mubr.bf16.gmra.mrb[0].mxu0 %v76
    %v175 = vpop.f32.mrb[0].mxu0
    %v176 = vadd.f32 0.0, %v175
    %v177 = vpop.f32.mrb[0].mxu0
    %v178 = vpop.f32.mrb[0].mxu0
    %v179 = vpop.f32.mrb[0].mxu0
    %180 = vdwg.mxu0
    %v181 = vrot.slane %v176, 4
    %v182 = vadd.f32 %v176, %v181
    %v183 = vrot.slane %v182, 2
    %v184 = vadd.f32 %v182, %v183
    %v185 = vrot.slane %v184, 1
    %v186 = vadd.f32 %v184, %v185
    %v187 = vmul.f32 %v176, %v176
    %v188 = vrot.slane %v187, 4
    %v189 = vadd.f32 %v187, %v188
    %v190 = vrot.slane %v189, 2
    %v191 = vadd.f32 %v189, %v190
    %v192 = vrot.slane %v191, 1
    %v193 = vadd.f32 %v191, %v192
    %v194 = vmul.f32 %v186, 0.125
    %v195 = vmul.f32 %v193, 0.125
    %v196 = vmul.f32 %v194, %v194
    %v197 = vsub.f32 %v195, %v196
    %v198 = vmax.f32 %v197, 0.0
    %v199 = vsub.f32 %v176, %v194
    %v200 = vadd.f32 %v198, 1e-05
    %v201 = vrsqrt.pop %v200
    %v202 = vmul.f32 %v199, %v201
    %v203 = vld [vmem:[%s2] sm:$0x1]
    %v205 = vlaneseq
    %v206 = vshrl.u32 %v205, 7
    %v207 = vsub.s32 0, %v206
    %v208 = vrot.slane %v203, %v207
    %v210 = vmul.f32 %v202, %v208
    %v211 = vld [vmem:[%s3] sm:$0x1]
    %v213 = vlaneseq
    %v214 = vshrl.u32 %v213, 7
    %v215 = vsub.s32 0, %v214
    %v216 = vrot.slane %v211, %v215
    %v218 = vadd.f32 %v210, %v216
    %v219 = vmax.f32 %v218, 0.0
    %v220 = vld [vmem:[%s4] sm:$0xff]
    %v221 = vmul.f32 %v219, %v220
    %v222 = vld [vmem:[#allocation2] sm:$0xff]
    %v223 = vpack.c.bf16 %v221, %v221
    %v224 = vld [vmem:[#allocation8] sm:$0xf]
    %v225 = vld [vmem:[#allocation8 + $0x4] sm:$0xf]
    %v226 = vld [vmem:[#allocation8 + $0x8] sm:$0xf]
    %v227 = vld [vmem:[#allocation8 + $0xc] sm:$0xf]
    %v228 = vld [vmem:[#allocation8 + $0x10] sm:$0xf]
    %v229 = vld [vmem:[#allocation8 + $0x14] sm:$0xf]
    %v230 = vld [vmem:[#allocation8 + $0x18] sm:$0xf]
    %v231 = vld [vmem:[#allocation8 + $0x1c] sm:$0xf]
    %v232 = vld [vmem:[#allocation8 + $0x20] sm:$0xf]
    %v233 = vld [vmem:[#allocation8 + $0x24] sm:$0xf]
    %v234 = vld [vmem:[#allocation8 + $0x28] sm:$0xf]
    %v235 = vld [vmem:[#allocation8 + $0x2c] sm:$0xf]
    %v236 = vld [vmem:[#allocation8 + $0x30] sm:$0xf]
    %v237 = vld [vmem:[#allocation8 + $0x34] sm:$0xf]
    %v238 = vld [vmem:[#allocation8 + $0x38] sm:$0xf]
    %v239 = vld [vmem:[#allocation8 + $0x3c] sm:$0xf]
    %v256 = vunpack.c.l.b16 %v224
    %v257 = vunpack.c.l.b16 %v225
    %v258 = vunpack.c.l.b16 %v226
    %v259 = vunpack.c.l.b16 %v227
    %v260 = vunpack.c.l.b16 %v228
    %v261 = vunpack.c.l.b16 %v229
    %v262 = vunpack.c.l.b16 %v230
    %v263 = vunpack.c.l.b16 %v231
    %v264 = vunpack.c.l.b16 %v232
    %v265 = vunpack.c.l.b16 %v233
    %v266 = vunpack.c.l.b16 %v234
    %v267 = vunpack.c.l.b16 %v235
    %v268 = vunpack.c.l.b16 %v236
    %v269 = vunpack.c.l.b16 %v237
    %v270 = vunpack.c.l.b16 %v238
    %v271 = vunpack.c.l.b16 %v239
    %v272 = vpack.c.b16 %v257, %v256
    %v273 = vpack.c.b16 %v259, %v258
    %v274 = vpack.c.b16 %v261, %v260
    %v275 = vpack.c.b16 %v263, %v262
    %v276 = vpack.c.b16 %v265, %v264
    %v277 = vpack.c.b16 %v267, %v266
    %v278 = vpack.c.b16 %v269, %v268
    %v279 = vpack.c.b16 %v271, %v270
    %288 = vmatprep.subr.bf16.mxu0 0
    %289 = vmatpush1.bf16.xpose.msra.mxu0 %v272
    %290 = vmatprep.subr.bf16.mxu0 0
    %291 = vmatpush1.bf16.xpose.msra.mxu0 %v273
    %292 = vmatprep.subr.bf16.mxu0 0
    %293 = vmatpush1.bf16.xpose.msra.mxu0 %v274
    %294 = vmatprep.subr.bf16.mxu0 0
    %295 = vmatpush1.bf16.xpose.msra.mxu0 %v275
    %296 = vmatprep.subr.bf16.mxu0 0
    %297 = vmatpush1.bf16.xpose.msra.mxu0 %v276
    %298 = vmatprep.subr.bf16.mxu0 0
    %299 = vmatpush1.bf16.xpose.msra.mxu0 %v277
    %300 = vmatprep.subr.bf16.mxu0 0
    %301 = vmatpush1.bf16.xpose.msra.mxu0 %v278
    %302 = vmatprep.subr.bf16.mxu0 0
    %303 = vmatpush1.bf16.xpose.msra.mxu0 %v279
    %304 = vmatprep.subr.bf16.mxu0 0
    %305 = vmatpush1.bf16.xpose.msra.mxu0 0
    %306 = vmatprep.subr.bf16.mxu0 0
    %307 = vmatpush1.bf16.xpose.msra.mxu0 0
    %308 = vmatprep.subr.bf16.mxu0 0
    %309 = vmatpush1.bf16.xpose.msra.mxu0 0
    %310 = vmatprep.subr.bf16.mxu0 0
    %311 = vmatpush1.bf16.xpose.msra.mxu0 0
    %312 = vmatprep.subr.bf16.mxu0 0
    %313 = vmatpush1.bf16.xpose.msra.mxu0 0
    %314 = vmatprep.subr.bf16.mxu0 0
    %315 = vmatpush1.bf16.xpose.msra.mxu0 0
    %316 = vmatprep.subr.bf16.mxu0 0
    %317 = vmatpush1.bf16.xpose.msra.mxu0 0
    %318 = vmatprep.subr.bf16.mxu0 0
    %319 = vmatpush1.bf16.xpose.msra.mxu0 0
    %320 = vmatprep.mubr.bf16.mxu0 0
    %321 = vmatmul.mubr.bf16.gmra.mrb[0].mxu0 %v223
    %v322 = vpop.f32.mrb[0].mxu0
    %v323 = vadd.f32 0.0, %v322
    %v324 = vpop.f32.mrb[0].mxu0
    %v325 = vpop.f32.mrb[0].mxu0
    %v326 = vpop.f32.mrb[0].mxu0
    %327 = vdwg.mxu0
    %v328 = vadd.f32 %v222, %v323
    %329 = vst [vmem:[#allocation2] sm:$0xff] %v328
    // Predicated region
    $region50: #{tpu_custom_call.1} parent=1 // pred_check
      %p330 = pneg %p70
    $region51: #{tpu_custom_call.1} parent=1 // pred_check_branch
      %332 = sbr.rel (%p330) target = $region53
    $region52: #{tpu_custom_call.1} parent=1 // pred_region
      %v333 = vld [vmem:[#allocation2] sm:$0xff]
      %v334 = vrot.slane %v333, 4
      %v335 = vadd.f32 %v333, %v334
      %v336 = vrot.slane %v335, 2
      %v337 = vadd.f32 %v335, %v336
      %v338 = vrot.slane %v337, 1
      %v339 = vadd.f32 %v337, %v338
      %v340 = vmul.f32 %v333, %v333
      %v341 = vrot.slane %v340, 4
      %v342 = vadd.f32 %v340, %v341
      %v343 = vrot.slane %v342, 2
      %v344 = vadd.f32 %v342, %v343
      %v345 = vrot.slane %v344, 1
      %v346 = vadd.f32 %v344, %v345
      %v347 = vmul.f32 %v339, 0.125
      %v348 = vmul.f32 %v346, 0.125
      %v349 = vmul.f32 %v347, %v347
      %v350 = vsub.f32 %v348, %v349
      %v351 = vmax.f32 %v350, 0.0
      %v352 = vsub.f32 %v333, %v347
      %v353 = vadd.f32 %v351, 1e-05
      %v354 = vrsqrt.pop %v353
      %v355 = vmul.f32 %v352, %v354
      %v356 = vld [vmem:[%s6] sm:$0x1]
      %v358 = vlaneseq
      %v359 = vshrl.u32 %v358, 7
      %v360 = vsub.s32 0, %v359
      %v361 = vrot.slane %v356, %v360
      %v363 = vmul.f32 %v355, %v361
      %v364 = vld [vmem:[%s7] sm:$0x1]
      %v366 = vlaneseq
      %v367 = vshrl.u32 %v366, 7
      %v368 = vsub.s32 0, %v367
      %v369 = vrot.slane %v364, %v368
      %v371 = vadd.f32 %v363, %v369
      %v372 = vadd.f32 %v371, %v75
      %v373 = vmax.f32 %v372, 0.0
      %374 = vst [vmem:[#allocation9] sm:$0xff] %v373
    $region53: #{tpu_custom_call.1} parent=1 // pred_fallthru
      _
    // Predicated region
    $region54: #{tpu_custom_call.1} parent=1 // pred_check
      _
    $region55: #{tpu_custom_call.1} parent=1 // pred_check_branch
      %376 = sbr.rel (0) target = $region57
    $region56: #{tpu_custom_call.1} parent=1 // pred_region
      %s378 = ssub.s32 128, 128
      %379 = vsyncadd [#allocation5], %s378
      %s381 = sshll.u32 [#allocation9], 4
      %s382 = int_to_ptr.vmem [resolvable:$true] %s381
      %384 = dma.vmem_to_hbm [thread:$0]  %s382, 128, %s8, [#allocation5]
    $region57: #{tpu_custom_call.1} parent=1 // pred_fallthru
      _
    // Predicated region
    $region58: #{tpu_custom_call.1} parent=1 // pred_check
      _
    $region59: #{tpu_custom_call.1} parent=1 // pred_check_branch
      %386 = sbr.rel (0) target = $region61
    $region60: #{tpu_custom_call.1} parent=1 // pred_region
      %387 = dma.done [#allocation5], 128
    $region61: #{tpu_custom_call.1} parent=1 // pred_fallthru
      _
    %388 = vsyncpa [#allocation4], 1
    %389 = vsyncpa [#allocation7], 1
    %390 = vsyncpa [#allocation5], 1

</llo_original>
